<compile_context>
chip_gen: v6e
topology: v6e:2x2x1
jax: 0.10.0
libtpu: 0.0.40
codegen_flags: <defaults>
</compile_context>

<pallas_src>
import functools

import jax
import jax.numpy as jnp
from jax.experimental import pallas as pl
from jax.experimental.pallas import tpu as pltpu


def selector_kernel(x_ref, w1_ref, b1_ref, w2_ref, b2_ref, o_ref, *, mxu_dtype):
    x = x_ref[...]
    if mxu_dtype is not None:
        x = x.astype(mxu_dtype)                       # free VPU cast, hidden under the MXU

    # Layer 1 on the MXU: (TB, D) @ (D, H) with f32 accumulation.
    h = jnp.dot(x, w1_ref[...], preferred_element_type=jnp.float32)
    h = jnp.maximum(h + b1_ref[...], 0.0)             # bias + ReLU (f32, VPU)

    # Layer 2 (H -> 1): VPU multiply + lane reduction instead of an N=1 MXU matmul.
    z = jnp.sum(h * w2_ref[...], axis=-1)             # (TB,)
    z = z + b2_ref[0, 0]                               # scalar bias read from SMEM

    # Sigmoid: exp on the EUP, approximate reciprocal also on the EUP (frees VALU slots).
    sig = pl.reciprocal(1.0 + jnp.exp(-z), approx=True)
    o_ref[...] = sig[None, :].astype(o_ref.dtype)      # lane-dense (1, TB) store


def _choose_batch_tile(B, D, x_itemsize, tb_cap=1024):
    """Whole batch if small; otherwise a 256/512/1024-row tile that keeps >= 2 grid steps
    (for v7x's two TensorCores) and the double-buffered x tile within ~32 MiB of VMEM."""
    if B <= 256:
        return B
    tb = 256
    for cand in (512, 1024):
        if cand > tb_cap:
            break
        if pl.cdiv(B, cand) < 2:                        # keep >= 2 tiles for megacore
            break
        if 2 * cand * D * x_itemsize > 32 * 1024 * 1024:  # x double-buffer budget
            break
        tb = cand
    return tb


def selector_forward(x, w1, b1, w2, b2, *, use_bf16=True, tb_cap=1024):
    """Forward pass of SelectorNetwork. x: (B, D) float -> (B, 1) float32 in [0, 1]."""
    B, D = x.shape
    H = w1.shape[1]
    x_itemsize = jnp.dtype(x.dtype).itemsize
    TB = _choose_batch_tile(B, D, x_itemsize, tb_cap)

    mxu_dtype = jnp.bfloat16 if use_bf16 else None
    # w1 is tiny (D x 128) and VMEM-resident; casting it once in the wrapper is cheap and
    # halves its footprint.  x is deliberately NOT touched in the wrapper.
    w1k = w1.astype(jnp.bfloat16) if use_bf16 else jnp.asarray(w1, jnp.float32)
    b1r = jnp.asarray(b1, jnp.float32).reshape(1, H)
    w2r = jnp.asarray(w2, jnp.float32).reshape(1, H)    # (H, 1) -> row vector (== w2.T)
    b2r = jnp.asarray(b2, jnp.float32).reshape(1, 1)

    w_itemsize = 2 if use_bf16 else 4
    vmem_est = (2 * TB * D * x_itemsize                  # x double buffer
                + 2 * D * H * w_itemsize                 # w1 (constant block, 2 bufs)
                + 2 * 2 * H * 4                          # b1 + w2
                + 2 * TB * 4                             # output double buffer
                + 3 * TB * H * 4)                        # h / temporaries headroom
    vmem_limit = int(min(48 * 1024 * 1024, max(2 * vmem_est, 32 * 1024 * 1024)))

    grid = (pl.cdiv(B, TB),)   # ragged tail handled by Pallas masked last-block writes

    out_row = pl.pallas_call(
        functools.partial(selector_kernel, mxu_dtype=mxu_dtype),
        out_shape=jax.ShapeDtypeStruct((1, B), jnp.float32),
        grid=grid,
        in_specs=[
            pl.BlockSpec((TB, D), lambda i: (i, 0)),            # streamed batch tile
            pl.BlockSpec((D, H), lambda i: (0, 0)),             # VMEM-resident weights
            pl.BlockSpec((1, H), lambda i: (0, 0)),             # b1 row, VMEM-resident
            pl.BlockSpec((1, H), lambda i: (0, 0)),             # w2 row, VMEM-resident
            pl.BlockSpec(memory_space=pltpu.MemorySpace.SMEM),  # scalar b2 in SMEM
        ],
        out_specs=pl.BlockSpec((1, TB), lambda i: (0, i)),      # lane-dense output blocks
        compiler_params=pltpu.CompilerParams(
            dimension_semantics=("parallel",),
            vmem_limit_bytes=vmem_limit,
        ),
    )(x, w1k, b1r, w2r, b2r)

    return out_row.reshape(B, 1)


def init_params(key, input_dim, hidden=128, out_dim=1):
    # Mirrors nn.Linear's U(-1/sqrt(fan_in), 1/sqrt(fan_in)) init; weights stored transposed
    # (in_features, out_features) so the kernel computes x @ W + b directly.
    k1, k2, k3, k4 = jax.random.split(key, 4)
    lim1 = 1.0 / jnp.sqrt(jnp.float32(input_dim))
    lim2 = 1.0 / jnp.sqrt(jnp.float32(hidden))
    w1 = jax.random.uniform(k1, (input_dim, hidden), jnp.float32, -lim1, lim1)
    b1 = jax.random.uniform(k2, (hidden,), jnp.float32, -lim1, lim1)
    w2 = jax.random.uniform(k3, (hidden, out_dim), jnp.float32, -lim2, lim2)
    b2 = jax.random.uniform(k4, (out_dim,), jnp.float32, -lim2, lim2)
    return w1, b1, w2, b2


def reference_forward(x, w1, b1, w2, b2):
    # Same math as the PyTorch module, in plain JAX (f32).
    return jax.nn.sigmoid(jnp.maximum(x @ w1 + b1, 0.0) @ w2 + b2)


if __name__ == "__main__":
    key = jax.random.PRNGKey(0)
    kx, kp, kx2 = jax.random.split(key, 3)

    # Small demo shape matching the module (input_dim = 32).
    B, D = 8, 32
    x = jax.random.normal(kx, (B, D), jnp.float32)
    params = init_params(kp, D)
    ref = reference_forward(x, *params)

    # Full-f32 path (tight-ish tolerance; approx reciprocal is the only approximation).
    out_f32 = jax.block_until_ready(selector_forward(x, *params, use_bf16=False))
    assert out_f32.shape == (B, 1)
    assert jnp.allclose(out_f32, ref, atol=1e-2), float(jnp.max(jnp.abs(out_f32 - ref)))

    # bf16 MXU path (in-kernel cast of x; f32 accumulation).
    out_bf16 = jax.block_until_ready(selector_forward(x, *params, use_bf16=True))
    assert out_bf16.shape == (B, 1)
    assert jnp.allclose(out_bf16, ref, atol=2e-2), float(jnp.max(jnp.abs(out_bf16 - ref)))

    # Larger, non-divisible batch: multi-tile grid + ragged last block, no padding pass.
    B2, D2 = 1000, 128
    x2 = jax.random.normal(kx2, (B2, D2), jnp.float32)
    params2 = init_params(kp, D2)
    out2 = jax.block_until_ready(selector_forward(x2, *params2))
    ref2 = reference_forward(x2, *params2)
    assert out2.shape == (B2, 1)
    assert jnp.allclose(out2, ref2, atol=2e-2), float(jnp.max(jnp.abs(out2 - ref2)))

    print("KERNEL_OK")
</pallas_src>

<mosaic_0001>
module attributes {stable_mosaic.version = 11 : i64} {
  func.func @selector_kernel(%arg0: i32, %arg1: memref<8x32xf32, #tpu.memory_space<vmem>>, %arg2: memref<32x128xf32, #tpu.memory_space<vmem>>, %arg3: memref<1x128xf32, #tpu.memory_space<vmem>>, %arg4: memref<1x128xf32, #tpu.memory_space<vmem>>, %arg5: memref<1x1xf32, #tpu.memory_space<smem>>, %arg6: memref<1x8xf32, #tpu.memory_space<vmem>>) attributes {dimension_semantics = [#tpu.dimension_semantics<parallel>], iteration_bounds = array<i64: 1>, scalar_prefetch = 0 : i64, scratch_operands = 0 : i64, tpu.core_type = #tpu.core_type<tc>, window_params = [{transform_indices = @transform_0, window_bounds = array<i64: 8, 32>}, {pipeline_mode = #tpu.pipeline_mode<synchronous>, transform_indices = @transform_1, window_bounds = array<i64: 32, 128>}, {pipeline_mode = #tpu.pipeline_mode<synchronous>, transform_indices = @transform_2, window_bounds = array<i64: 1, 128>}, {pipeline_mode = #tpu.pipeline_mode<synchronous>, transform_indices = @transform_3, window_bounds = array<i64: 1, 128>}, {transform_indices = @transform_4, window_bounds = array<i64: 1, 1>}, {transform_indices = @transform_5, window_bounds = array<i64: 1, 8>}]} {
    %c0 = arith.constant 0 : index
    %c0_0 = arith.constant 0 : index
    %0 = vector.load %arg1[%c0, %c0_0] : memref<8x32xf32, #tpu.memory_space<vmem>>, vector<8x32xf32>
    %c0_1 = arith.constant 0 : index
    %c0_2 = arith.constant 0 : index
    %1 = vector.load %arg2[%c0_1, %c0_2] : memref<32x128xf32, #tpu.memory_space<vmem>>, vector<32x128xf32>
    %cst = arith.constant dense<0.000000e+00> : vector<8x128xf32>
    %2 = tpu.matmul %0, %1, %cst {dimension_numbers = #tpu.dot_dimension_numbers<[1], [0], [0], [1], [0, 0, 1, 1], [], []>} : vector<8x32xf32>, vector<32x128xf32>, vector<8x128xf32> -> vector<8x128xf32>
    %c0_3 = arith.constant 0 : index
    %c0_4 = arith.constant 0 : index
    %3 = vector.load %arg3[%c0_3, %c0_4] : memref<1x128xf32, #tpu.memory_space<vmem>>, vector<1x128xf32>
    %4 = vector.broadcast %3 : vector<1x128xf32> to vector<8x128xf32>
    %5 = arith.addf %2, %4 : vector<8x128xf32>
    %cst_5 = arith.constant 0.000000e+00 : f32
    %6 = vector.broadcast %cst_5 : f32 to vector<8x128xf32>
    %7 = arith.maximumf %5, %6 : vector<8x128xf32>
    %c0_6 = arith.constant 0 : index
    %c0_7 = arith.constant 0 : index
    %8 = vector.load %arg4[%c0_6, %c0_7] : memref<1x128xf32, #tpu.memory_space<vmem>>, vector<1x128xf32>
    %9 = vector.broadcast %8 : vector<1x128xf32> to vector<8x128xf32>
    %10 = arith.mulf %7, %9 : vector<8x128xf32>
    %cst_8 = arith.constant dense<0.000000e+00> : vector<8xf32>
    %11 = vector.multi_reduction <add>, %10, %cst_8 [1] : vector<8x128xf32> to vector<8xf32>
    %c0_9 = arith.constant 0 : index
    %c0_10 = arith.constant 0 : index
    %12 = memref.load %arg5[%c0_9, %c0_10] : memref<1x1xf32, #tpu.memory_space<smem>>
    %13 = vector.broadcast %12 : f32 to vector<8xf32>
    %14 = arith.addf %11, %13 : vector<8xf32>
    %cst_11 = arith.constant 0.000000e+00 : f32
    %15 = vector.broadcast %cst_11 : f32 to vector<8xf32>
    %16 = arith.subf %15, %14 : vector<8xf32>
    %17 = math.exp %16 : vector<8xf32>
    %cst_12 = arith.constant 1.000000e+00 : f32
    %18 = vector.broadcast %cst_12 : f32 to vector<8xf32>
    %19 = arith.addf %18, %17 : vector<8xf32>
    %20 = tpu.reciprocal %19 {approx = true} : vector<8xf32> -> vector<8xf32>
    %21 = vector.shape_cast %20 : vector<8xf32> to vector<1x8xf32>
    %c0_13 = arith.constant 0 : index
    %c0_14 = arith.constant 0 : index
    %22 = vector.load %arg6[%c0_13, %c0_14] : memref<1x8xf32, #tpu.memory_space<vmem>>, vector<1x8xf32>
    tpu.vector_store %arg6[%c0_13, %c0_14], %21 {strides = array<i32>} : memref<1x8xf32, #tpu.memory_space<vmem>>, vector<1x8xf32>,
    return
  }
  func.func @transform_0(%arg0: i32) -> (i32, i32) {
    %c0_i32 = arith.constant 0 : i32
    %c0_i32_0 = arith.constant 0 : i32
    return %arg0, %c0_i32 : i32, i32
  }
  func.func @transform_1(%arg0: i32) -> (i32, i32) {
    %c0_i32 = arith.constant 0 : i32
    %c0_i32_0 = arith.constant 0 : i32
    %c0_i32_1 = arith.constant 0 : i32
    return %c0_i32, %c0_i32_0 : i32, i32
  }
  func.func @transform_2(%arg0: i32) -> (i32, i32) {
    %c0_i32 = arith.constant 0 : i32
    %c0_i32_0 = arith.constant 0 : i32
    %c0_i32_1 = arith.constant 0 : i32
    return %c0_i32, %c0_i32_0 : i32, i32
  }
  func.func @transform_3(%arg0: i32) -> (i32, i32) {
    %c0_i32 = arith.constant 0 : i32
    %c0_i32_0 = arith.constant 0 : i32
    %c0_i32_1 = arith.constant 0 : i32
    return %c0_i32, %c0_i32_0 : i32, i32
  }
  func.func @transform_4(%arg0: i32) -> (i32, i32) {
    %c0_i32 = arith.constant 0 : i32
    %c0_i32_0 = arith.constant 0 : i32
    %c0_i32_1 = arith.constant 0 : i32
    return %c0_i32, %c0_i32_0 : i32, i32
  }
  func.func @transform_5(%arg0: i32) -> (i32, i32) {
    %c0_i32 = arith.constant 0 : i32
    %c0_i32_0 = arith.constant 0 : i32
    return %c0_i32, %arg0 : i32, i32
  }
}

</mosaic_0001>

<llo_original>
// kernel: tpu_custom_call.1
$region0: #{tpu_custom_call.1}
  #allocation0 [shape = 'u32[]', space=smem, size = 0x4, offset = 0x4, fixed_abs, tag = 'smem constant byte address 0x4 - core index']
  #allocation1 [shape = 'u32[144,128]{1,0:T(1,128)}', space=vmem, size = 0x12000, scoped, tag = 'internal scratch']
  #allocation2 [shape = 'f32[1,1]{1,0:T(1,128)S(6)}', space=smem, size = 0x200, scoped, tag = 'scoped memory for tpu_custom_call.1']
  %s0 = inlined_call_operand.hbm [shape: f32[8,32], index: 0, kind: input, shape index: {}]
  %s1 = inlined_call_operand.hbm [shape: f32[32,128], index: 1, kind: input, shape index: {}]
  %s2 = inlined_call_operand.vmem [shape: f32[1,128], index: 2, kind: input, shape index: {}]
  %s3 = inlined_call_operand.vmem [shape: f32[1,128], index: 3, kind: input, shape index: {}]
  %s4 = inlined_call_operand.<no memory space> [shape: f32[1,1], index: 4, kind: input, shape index: {}]
  %s5 = inlined_call_operand.hbm [shape: f32[1,8], index: 5, kind: output, shape index: {}]
  %s6 = sld [smem:[#allocation0]]
  $region38: #{tpu_custom_call.1} parent=0
    _
  %s8 = ssub.s32 1, %s6
  %s9 = scalar_select 0, %s8, %s6
  %10 = sst [smem:[#allocation2]] %s4
  $region1: #{tpu_custom_call.1} parent=0
    #allocation3 [shape = 'u8[4096]{0}', space=vmem, size = 0x1000, scoped, tag = 'input window, operand 0, single buffered']
    #allocation4 [shape = 's32[1]{0}', space=sflag, size = 0x4, scoped, tag = 'scoped memory for tpu_custom_call.1']
    #allocation5 [shape = 's32[1]{0}', space=sflag, size = 0x4, scoped, tag = 'scoped memory for tpu_custom_call.1']
    #allocation6 [shape = 'u8[16384]{0}', space=vmem, size = 0x4000, scoped, tag = 'input window, operand 1, single buffered']
    #allocation7 [shape = 's32[1]{0}', space=sflag, size = 0x4, scoped, tag = 'scoped memory for tpu_custom_call.1']
    #allocation8 [shape = 'u8[512]{0}', space=vmem, size = 0x400, scoped, tag = 'output window, operand 0, single buffered']
    %11 = vsyncpa [#allocation4], 0
    %12 = vsyncpa [#allocation7], 0
    %13 = vsyncpa [#allocation5], 0
    // Predicated region
    $region2: #{tpu_custom_call.1} parent=1 // pred_check
      _
    $region3: #{tpu_custom_call.1} parent=1 // pred_check_branch
      %15 = sbr.rel (0) target = $region5
    $region4: #{tpu_custom_call.1} parent=1 // pred_region
      %s17 = ssub.s32 128, 128
      %18 = vsyncadd [#allocation4], %s17
      %s20 = sshll.u32 [#allocation3], 4
      %s21 = int_to_ptr.vmem [resolvable:$true] %s20
      %23 = dma.hbm_to_vmem [thread:$0]  %s0, 128, %s21, [#allocation4]
    $region5: #{tpu_custom_call.1} parent=1 // pred_fallthru
      _
    // Predicated region
    $region6: #{tpu_custom_call.1} parent=1 // pred_check
      _
    $region7: #{tpu_custom_call.1} parent=1 // pred_check_branch
      %25 = sbr.rel (0) target = $region9
    $region8: #{tpu_custom_call.1} parent=1 // pred_region
      %s27 = ssub.s32 512, 512
      %28 = vsyncadd [#allocation7], %s27
      %s29 = sshll.u32 [#allocation6], 4
      %s30 = int_to_ptr.vmem [resolvable:$true] %s29
      %35 = dma.hbm_to_vmem [thread:$0]  %s1, 512, %s30, [#allocation7], 128, 128, 8
    $region9: #{tpu_custom_call.1} parent=1 // pred_fallthru
      _
    // Predicated region
    $region10: #{tpu_custom_call.1} parent=1 // pred_check
      _
    $region11: #{tpu_custom_call.1} parent=1 // pred_check_branch
      %37 = sbr.rel (0) target = $region13
    $region12: #{tpu_custom_call.1} parent=1 // pred_region
      _
    $region13: #{tpu_custom_call.1} parent=1 // pred_fallthru
      _
    // Predicated region
    $region14: #{tpu_custom_call.1} parent=1 // pred_check
      _
    $region15: #{tpu_custom_call.1} parent=1 // pred_check_branch
      %39 = sbr.rel (0) target = $region17
    $region16: #{tpu_custom_call.1} parent=1 // pred_region
      _
    $region17: #{tpu_custom_call.1} parent=1 // pred_fallthru
      _
    // Predicated region
    $region18: #{tpu_custom_call.1} parent=1 // pred_check
      _
    $region19: #{tpu_custom_call.1} parent=1 // pred_check_branch
      %41 = sbr.rel (0) target = $region21
    $region20: #{tpu_custom_call.1} parent=1 // pred_region
      _
    $region21: #{tpu_custom_call.1} parent=1 // pred_fallthru
      _
    // Predicated region
    $region22: #{tpu_custom_call.1} parent=1 // pred_check
      _
    $region23: #{tpu_custom_call.1} parent=1 // pred_check_branch
      %43 = sbr.rel (0) target = $region25
    $region24: #{tpu_custom_call.1} parent=1 // pred_region
      %44 = dma.done [#allocation4], 128
    $region25: #{tpu_custom_call.1} parent=1 // pred_fallthru
      _
    // Predicated region
    $region26: #{tpu_custom_call.1} parent=1 // pred_check
      _
    $region27: #{tpu_custom_call.1} parent=1 // pred_check_branch
      %46 = sbr.rel (0) target = $region29
    $region28: #{tpu_custom_call.1} parent=1 // pred_region
      %47 = dma.done [#allocation7], 512
    $region29: #{tpu_custom_call.1} parent=1 // pred_fallthru
      _
    %v48 = vld [vmem:[#allocation3] sm:$0xff]
    %v49 = vld [vmem:[#allocation6] sm:$0xff]
    %v50 = vld [vmem:[#allocation6 + $0x8] sm:$0xff]
    %v51 = vld [vmem:[#allocation6 + $0x10] sm:$0xff]
    %v52 = vld [vmem:[#allocation6 + $0x18] sm:$0xff]
    %v53 = vld [vmem:[%s2] sm:$0x1]
    %v55 = vlaneseq
    %v56 = vshrl.u32 %v55, 7
    %v57 = vsub.s32 0, %v56
    %v58 = vrot.slane %v53, %v57
    %vm60 = vcmask 261120
    %v62 = vsel %vm60, %v48, 0
    %64 = vmatprep.subr.mxu0 0.0
    %65 = vmatpush1.msra.mxu0 0.0
    %66 = vmatprep.subr.mxu0 0.0
    %67 = vmatpush1.msra.mxu0 0.0
    %68 = vmatprep.subr.mxu0 0.0
    %69 = vmatpush1.msra.mxu0 0.0
    %70 = vmatprep.subr.mxu0 0.0
    %71 = vmatpush1.msra.mxu0 0.0
    %72 = vmatprep.subr.mxu0 0.0
    %73 = vmatpush1.msra.mxu0 0.0
    %74 = vmatprep.subr.mxu0 0.0
    %75 = vmatpush1.msra.mxu0 0.0
    %76 = vmatprep.subr.mxu0 0.0
    %77 = vmatpush1.msra.mxu0 0.0
    %78 = vmatprep.subr.mxu0 0.0
    %79 = vmatpush1.msra.mxu0 0.0
    %80 = vmatprep.subr.mxu0 0.0
    %81 = vmatpush1.msra.mxu0 0.0
    %82 = vmatprep.subr.mxu0 0.0
    %83 = vmatpush1.msra.mxu0 0.0
    %84 = vmatprep.subr.mxu0 0.0
    %85 = vmatpush1.msra.mxu0 0.0
    %86 = vmatprep.subr.mxu0 0.0
    %87 = vmatpush1.msra.mxu0 0.0
    %88 = vmatprep.subr.mxu0 0.0
    %89 = vmatpush1.msra.mxu0 %v52
    %90 = vmatprep.subr.mxu0 0.0
    %91 = vmatpush1.msra.mxu0 %v51
    %92 = vmatprep.subr.mxu0 0.0
    %93 = vmatpush1.msra.mxu0 %v50
    %94 = vmatprep.subr.mxu0 0.0
    %95 = vmatpush1.msra.mxu0 %v49
    %96 = vmatprep.subr.mxu0 0.0
    %97 = vmatpush2.msra.mxu0 0.0
    %98 = vmatprep.subr.mxu0 0.0
    %99 = vmatpush2.msra.mxu0 0.0
    %100 = vmatprep.subr.mxu0 0.0
    %101 = vmatpush2.msra.mxu0 0.0
    %102 = vmatprep.subr.mxu0 0.0
    %103 = vmatpush2.msra.mxu0 0.0
    %104 = vmatprep.subr.mxu0 0.0
    %105 = vmatpush2.msra.mxu0 0.0
    %106 = vmatprep.subr.mxu0 0.0
    %107 = vmatpush2.msra.mxu0 0.0
    %108 = vmatprep.subr.mxu0 0.0
    %109 = vmatpush2.msra.mxu0 0.0
    %110 = vmatprep.subr.mxu0 0.0
    %111 = vmatpush2.msra.mxu0 0.0
    %112 = vmatprep.subr.mxu0 0.0
    %113 = vmatpush2.msra.mxu0 0.0
    %114 = vmatprep.subr.mxu0 0.0
    %115 = vmatpush2.msra.mxu0 0.0
    %116 = vmatprep.subr.mxu0 0.0
    %117 = vmatpush2.msra.mxu0 0.0
    %118 = vmatprep.subr.mxu0 0.0
    %119 = vmatpush2.msra.mxu0 0.0
    %120 = vmatprep.subr.mxu0 0.0
    %121 = vmatpush2.msra.mxu0 0.0
    %122 = vmatprep.subr.mxu0 0.0
    %123 = vmatpush2.msra.mxu0 0.0
    %124 = vmatprep.subr.mxu0 0.0
    %125 = vmatpush2.msra.mxu0 0.0
    %126 = vmatprep.subr.mxu0 0.0
    %127 = vmatpush2.msra.mxu0 0.0
    %128 = vmatprep.mubr.f32.mxu0 0.0
    %129 = vmatmul.mubr.f32.gmra.mxu0 %v62
    %v130 = vpop.f32.mrf.mxu0
    %v131 = vadd.f32 %v58, %v130
    %v132 = vpop.f32.mrf.mxu0
    %133 = vdwg.mxu0
    %v134 = vmax.f32 %v131, 0.0
    %v135 = vld [vmem:[%s3] sm:$0x1]
    %v137 = vlaneseq
    %v138 = vshrl.u32 %v137, 7
    %v139 = vsub.s32 0, %v138
    %v140 = vrot.slane %v135, %v139
    %v142 = vmul.f32 %v134, %v140
    %143 = vadd.xlane.f32.xlu0 %v142
    %v144 = vpop.xlane.xlu0 %143
    %s145 = sld [smem:[#allocation2]]
    %v146 = vstv %s145
    %v147 = vadd.f32 %v144, %v146
    %v148 = vsub.f32 0.0, %v147
    %v149 = vmul.f32 %v148, 1.442695
    %v150 = vpow.pop %v149
    %v151 = vadd.f32 %v150, 1.0
    %v152 = vrcp.pop %v151
    %v154 = vlaneseq
    %v155 = vand.u32 %v154, 127
    %v156 = vlaneseq
    %v157 = vshrl.u32 %v156, 7
    %v158 = vsub.s32 %v155, %v157
    %v159 = vrot.slane %v152, %v158
    %vm161 = vcmask 57344
    %162 = vst.msk [vmem:[#allocation8] sm:$0x1] %vm161, %v159
    // Predicated region
    $region30: #{tpu_custom_call.1} parent=1 // pred_check
      _
    $region31: #{tpu_custom_call.1} parent=1 // pred_check_branch
      %164 = sbr.rel (0) target = $region33
    $region32: #{tpu_custom_call.1} parent=1 // pred_region
      %s166 = ssub.s32 16, 16
      %167 = vsyncadd [#allocation5], %s166
      %s169 = sshll.u32 [#allocation8], 4
      %s170 = int_to_ptr.vmem [resolvable:$true] %s169
      %172 = dma.vmem_to_hbm [thread:$0]  %s170, 16, %s5, [#allocation5]
    $region33: #{tpu_custom_call.1} parent=1 // pred_fallthru
      _
    // Predicated region
    $region34: #{tpu_custom_call.1} parent=1 // pred_check
      _
    $region35: #{tpu_custom_call.1} parent=1 // pred_check_branch
      %174 = sbr.rel (0) target = $region37
    $region36: #{tpu_custom_call.1} parent=1 // pred_region
      %175 = dma.done [#allocation5], 16
    $region37: #{tpu_custom_call.1} parent=1 // pred_fallthru
      _
    %176 = vsyncpa [#allocation4], 1
    %177 = vsyncpa [#allocation7], 1
    %178 = vsyncpa [#allocation5], 1

</llo_original>
